<compile_context>
chip_gen: v7x
topology: tpu7x:2x2x1
jax: 0.10.0
libtpu: 0.0.40
codegen_flags: <defaults>
</compile_context>

<pallas_src>
import jax
import jax.numpy as jnp
from jax.experimental import pallas as pl
from jax.experimental.pallas import tpu as pltpu

_IN_FEATS = 784          # 28 * 28 (flattened post-convolution input)
_HIDDEN = 128
_OUT = 10
_OUT_PAD = 128           # lane-dense output tile (cols 10..127 are zero)
_TB_MAX = 2048           # batch tile (f32 x tile 2048x784x4 ~= 6.3 MiB)


def _mlp_kernel(x_ref, w1_ref, b1_ref, w2_ref, b2_ref, o_ref):
    # Cast x -> bf16 in-kernel (VPU has huge slack); f32 accumulation on MXU.
    x = x_ref[...].astype(jnp.bfloat16)
    h = jnp.dot(x, w1_ref[...], preferred_element_type=jnp.float32)
    h = jnp.maximum(h + b1_ref[...], 0.0)
    out = jnp.dot(h.astype(jnp.bfloat16), w2_ref[...],
                  preferred_element_type=jnp.float32)
    o_ref[...] = (out + b2_ref[...]).astype(o_ref.dtype)


def pack_params(params):
    """One-time weight packing (hoisted out of the per-call wrapper).

    PyTorch Linear stores weight as (out, in); here we keep the transposed
    (in, out) layout so the kernel runs x @ W directly.
    """
    w1 = params["w1"].astype(jnp.bfloat16)                       # (784, 128)
    b1 = params["b1"].reshape(1, _HIDDEN).astype(jnp.float32)    # (1, 128)
    w2 = jnp.zeros((_HIDDEN, _OUT_PAD), jnp.bfloat16)
    w2 = w2.at[:, :_OUT].set(params["w2"].astype(jnp.bfloat16))  # (128, 128)
    b2 = jnp.zeros((1, _OUT_PAD), jnp.float32)
    b2 = b2.at[:, :_OUT].set(params["b2"].reshape(1, _OUT).astype(jnp.float32))
    return {"w1": w1, "b1": b1, "w2": w2, "b2": b2}


def _pick_tb(batch):
    """Batch tile: big for throughput, but >= 2 grid steps for mid-size
    batches so the parallel axis can shard across both TCs on v7x."""
    if batch <= 32:
        return batch                         # single full-extent block (legal)
    half = ((-(-batch // 2)) + 15) // 16 * 16
    return min(_TB_MAX, half)


def digit_model_forward(x, packed):
    """x: (B, 28, 28) or (B, 784) float32. Returns (B, 10) float32 logits."""
    x2d = x.reshape(-1, _IN_FEATS).astype(jnp.float32)
    batch = x2d.shape[0]
    tb = _pick_tb(batch)
    grid = (pl.cdiv(batch, tb),)

    cost = pl.CostEstimate(
        flops=2 * batch * _IN_FEATS * _HIDDEN + 2 * batch * _HIDDEN * _OUT_PAD,
        transcendentals=0,
        bytes_accessed=(batch * _IN_FEATS * 4            # x (f32, unpadded)
                        + _IN_FEATS * _HIDDEN * 2        # w1 (bf16)
                        + _HIDDEN * _OUT_PAD * 2         # w2 (bf16)
                        + (_HIDDEN + _OUT_PAD) * 4       # biases (f32)
                        + batch * _OUT_PAD * 2),         # out (bf16)
    )

    out_padded = pl.pallas_call(
        _mlp_kernel,
        out_shape=jax.ShapeDtypeStruct((batch, _OUT_PAD), jnp.bfloat16),
        grid=grid,
        in_specs=[
            pl.BlockSpec((tb, _IN_FEATS), lambda i: (i, 0)),        # x tile
            pl.BlockSpec((_IN_FEATS, _HIDDEN), lambda i: (0, 0)),   # w1 resident
            pl.BlockSpec((1, _HIDDEN), lambda i: (0, 0)),           # b1 resident
            pl.BlockSpec((_HIDDEN, _OUT_PAD), lambda i: (0, 0)),    # w2 resident
            pl.BlockSpec((1, _OUT_PAD), lambda i: (0, 0)),          # b2 resident
        ],
        out_specs=pl.BlockSpec((tb, _OUT_PAD), lambda i: (i, 0)),
        compiler_params=pltpu.CompilerParams(
            dimension_semantics=("parallel",),
            vmem_limit_bytes=64 << 20),      # headroom for tb=2048 f32 x on v5e
        cost_estimate=cost,
    )(x2d, packed["w1"], packed["b1"], packed["w2"], packed["b2"])

    return out_padded[:, :_OUT].astype(jnp.float32)


def init_params(key):
    """Deterministic parameter init matching the module's __init__ shapes."""
    k1, k2, k3, k4 = jax.random.split(key, 4)
    # Defined by the module but unused by forward(); kept for shape fidelity.
    conv_w = jnp.ones((3, 3), jnp.float32)

    lim1 = 1.0 / jnp.sqrt(784.0)
    lim2 = 1.0 / jnp.sqrt(128.0)
    w1 = jax.random.uniform(k1, (_IN_FEATS, _HIDDEN), jnp.float32, -lim1, lim1)
    b1 = jax.random.uniform(k2, (1, _HIDDEN), jnp.float32, -lim1, lim1)
    w2 = jax.random.uniform(k3, (_HIDDEN, _OUT), jnp.float32, -lim2, lim2)
    b2 = jax.random.uniform(k4, (1, _OUT), jnp.float32, -lim2, lim2)
    return {"conv_w": conv_w, "w1": w1, "b1": b1, "w2": w2, "b2": b2}


def _reference(x, params):
    x2d = x.reshape(-1, _IN_FEATS).astype(jnp.float32)
    h = jnp.maximum(x2d @ params["w1"] + params["b1"], 0.0)
    return h @ params["w2"] + params["b2"]


if __name__ == "__main__":
    key = jax.random.PRNGKey(0)
    kx, kp = jax.random.split(key)

    batch = 8
    x = jax.random.normal(kx, (batch, 28, 28), jnp.float32)  # MNIST-shaped input
    params = init_params(kp)
    packed = pack_params(params)   # one-time packing, outside the hot path

    logits = digit_model_forward(x, packed)
    logits = jax.block_until_ready(logits)

    ref = _reference(x, params)
    assert logits.shape == (batch, _OUT)
    # bf16 matmul inputs + bf16 output store with f32 accumulation:
    # relaxed tolerance vs the f32 reference.
    assert jnp.allclose(logits, ref, atol=5e-2, rtol=5e-2), (
        float(jnp.max(jnp.abs(logits - ref))))

    print("KERNEL_OK")
</pallas_src>

<mosaic_0001>
module attributes {stable_mosaic.version = 11 : i64} {
  func.func @_mlp_kernel(%arg0: i32, %arg1: memref<8x784xf32, #tpu.memory_space<vmem>>, %arg2: memref<784x128xbf16, #tpu.memory_space<vmem>>, %arg3: memref<1x128xf32, #tpu.memory_space<vmem>>, %arg4: memref<128x128xbf16, #tpu.memory_space<vmem>>, %arg5: memref<1x128xf32, #tpu.memory_space<vmem>>, %arg6: memref<8x128xbf16, #tpu.memory_space<vmem>>) attributes {dimension_semantics = [#tpu.dimension_semantics<parallel>], iteration_bounds = array<i64: 1>, scalar_prefetch = 0 : i64, scratch_operands = 0 : i64, tpu.core_type = #tpu.core_type<tc>, window_params = [{transform_indices = @transform_0, window_bounds = array<i64: 8, 784>}, {pipeline_mode = #tpu.pipeline_mode<synchronous>, transform_indices = @transform_1, window_bounds = array<i64: 784, 128>}, {pipeline_mode = #tpu.pipeline_mode<synchronous>, transform_indices = @transform_2, window_bounds = array<i64: 1, 128>}, {pipeline_mode = #tpu.pipeline_mode<synchronous>, transform_indices = @transform_3, window_bounds = array<i64: 128, 128>}, {pipeline_mode = #tpu.pipeline_mode<synchronous>, transform_indices = @transform_4, window_bounds = array<i64: 1, 128>}, {transform_indices = @transform_5, window_bounds = array<i64: 8, 128>}]} {
    %c0 = arith.constant 0 : index
    %c0_0 = arith.constant 0 : index
    %0 = vector.load %arg1[%c0, %c0_0] : memref<8x784xf32, #tpu.memory_space<vmem>>, vector<8x784xf32>
    %1 = arith.truncf %0 : vector<8x784xf32> to vector<8x784xbf16>
    %c0_1 = arith.constant 0 : index
    %c0_2 = arith.constant 0 : index
    %2 = vector.load %arg2[%c0_1, %c0_2] : memref<784x128xbf16, #tpu.memory_space<vmem>>, vector<784x128xbf16>
    %cst = arith.constant dense<0.000000e+00> : vector<8x128xf32>
    %3 = tpu.matmul %1, %2, %cst {dimension_numbers = #tpu.dot_dimension_numbers<[1], [0], [0], [1], [0, 0, 1, 1], [], []>} : vector<8x784xbf16>, vector<784x128xbf16>, vector<8x128xf32> -> vector<8x128xf32>
    %c0_3 = arith.constant 0 : index
    %c0_4 = arith.constant 0 : index
    %4 = vector.load %arg3[%c0_3, %c0_4] : memref<1x128xf32, #tpu.memory_space<vmem>>, vector<1x128xf32>
    %5 = vector.broadcast %4 : vector<1x128xf32> to vector<8x128xf32>
    %6 = arith.addf %3, %5 : vector<8x128xf32>
    %cst_5 = arith.constant 0.000000e+00 : f32
    %7 = vector.broadcast %cst_5 : f32 to vector<8x128xf32>
    %8 = arith.maximumf %6, %7 : vector<8x128xf32>
    %9 = arith.truncf %8 : vector<8x128xf32> to vector<8x128xbf16>
    %c0_6 = arith.constant 0 : index
    %c0_7 = arith.constant 0 : index
    %10 = vector.load %arg4[%c0_6, %c0_7] : memref<128x128xbf16, #tpu.memory_space<vmem>>, vector<128x128xbf16>
    %cst_8 = arith.constant dense<0.000000e+00> : vector<8x128xf32>
    %11 = tpu.matmul %9, %10, %cst_8 {dimension_numbers = #tpu.dot_dimension_numbers<[1], [0], [0], [1], [0, 0, 1, 1], [], []>} : vector<8x128xbf16>, vector<128x128xbf16>, vector<8x128xf32> -> vector<8x128xf32>
    %c0_9 = arith.constant 0 : index
    %c0_10 = arith.constant 0 : index
    %12 = vector.load %arg5[%c0_9, %c0_10] : memref<1x128xf32, #tpu.memory_space<vmem>>, vector<1x128xf32>
    %13 = vector.broadcast %12 : vector<1x128xf32> to vector<8x128xf32>
    %14 = arith.addf %11, %13 : vector<8x128xf32>
    %15 = arith.truncf %14 : vector<8x128xf32> to vector<8x128xbf16>
    %c0_11 = arith.constant 0 : index
    %c0_12 = arith.constant 0 : index
    %16 = vector.load %arg6[%c0_11, %c0_12] : memref<8x128xbf16, #tpu.memory_space<vmem>>, vector<8x128xbf16>
    tpu.vector_store %arg6[%c0_11, %c0_12], %15 {strides = array<i32>} : memref<8x128xbf16, #tpu.memory_space<vmem>>, vector<8x128xbf16>,
    return
  }
  func.func @transform_0(%arg0: i32) -> (i32, i32) {
    %c0_i32 = arith.constant 0 : i32
    %c0_i32_0 = arith.constant 0 : i32
    return %arg0, %c0_i32 : i32, i32
  }
  func.func @transform_1(%arg0: i32) -> (i32, i32) {
    %c0_i32 = arith.constant 0 : i32
    %c0_i32_0 = arith.constant 0 : i32
    %c0_i32_1 = arith.constant 0 : i32
    return %c0_i32, %c0_i32_0 : i32, i32
  }
  func.func @transform_2(%arg0: i32) -> (i32, i32) {
    %c0_i32 = arith.constant 0 : i32
    %c0_i32_0 = arith.constant 0 : i32
    %c0_i32_1 = arith.constant 0 : i32
    return %c0_i32, %c0_i32_0 : i32, i32
  }
  func.func @transform_3(%arg0: i32) -> (i32, i32) {
    %c0_i32 = arith.constant 0 : i32
    %c0_i32_0 = arith.constant 0 : i32
    %c0_i32_1 = arith.constant 0 : i32
    return %c0_i32, %c0_i32_0 : i32, i32
  }
  func.func @transform_4(%arg0: i32) -> (i32, i32) {
    %c0_i32 = arith.constant 0 : i32
    %c0_i32_0 = arith.constant 0 : i32
    %c0_i32_1 = arith.constant 0 : i32
    return %c0_i32, %c0_i32_0 : i32, i32
  }
  func.func @transform_5(%arg0: i32) -> (i32, i32) {
    %c0_i32 = arith.constant 0 : i32
    %c0_i32_0 = arith.constant 0 : i32
    return %arg0, %c0_i32 : i32, i32
  }
}

</mosaic_0001>

<llo_original>
// kernel: tpu_custom_call.1
$region0: #{tpu_custom_call.1}
  #allocation0 [shape = 'u32[]', space=smem, size = 0x4, offset = 0x4, fixed_abs, tag = 'smem constant byte address 0x4 - core index']
  #allocation1 [shape = 'u32[144,128]{1,0:T(1,128)}', space=vmem, size = 0x12000, scoped, tag = 'internal scratch']
  %s0 = inlined_call_operand.hbm [shape: f32[8,784], index: 0, kind: input, shape index: {}]
  %s1 = inlined_call_operand.hbm [shape: bf16[784,128], index: 1, kind: input, shape index: {}]
  %s2 = inlined_call_operand.hbm [shape: f32[1,128], index: 2, kind: input, shape index: {}]
  %s3 = inlined_call_operand.hbm [shape: bf16[128,128], index: 3, kind: input, shape index: {}]
  %s4 = inlined_call_operand.hbm [shape: f32[1,128], index: 4, kind: input, shape index: {}]
  %s5 = inlined_call_operand.hbm [shape: bf16[8,128], index: 5, kind: output, shape index: {}]
  %s6 = sld [smem:[#allocation0]]
  $region50: #{tpu_custom_call.1} parent=0
    _
  %s8 = ssub.s32 1, %s6
  %s9 = scalar_select 0, %s8, %s6
  $region1: #{tpu_custom_call.1} parent=0
    #allocation2 [shape = 'u8[28672]{0}', space=vmem, size = 0x7000, scoped, tag = 'input window, operand 0, single buffered']
    #allocation3 [shape = 's32[1]{0}', space=sflag, size = 0x4, scoped, tag = 'scoped memory for tpu_custom_call.1']
    #allocation4 [shape = 's32[1]{0}', space=sflag, size = 0x4, scoped, tag = 'scoped memory for tpu_custom_call.1']
    #allocation5 [shape = 'u8[200704]{0}', space=vmem, size = 0x31000, scoped, tag = 'input window, operand 1, single buffered']
    #allocation6 [shape = 's32[1]{0}', space=sflag, size = 0x4, scoped, tag = 'scoped memory for tpu_custom_call.1']
    #allocation7 [shape = 'u8[512]{0}', space=vmem, size = 0x400, scoped, tag = 'input window, operand 2, single buffered']
    #allocation8 [shape = 'u8[32768]{0}', space=vmem, size = 0x8000, scoped, tag = 'input window, operand 3, single buffered']
    #allocation9 [shape = 's32[1]{0}', space=sflag, size = 0x4, scoped, tag = 'scoped memory for tpu_custom_call.1']
    #allocation10 [shape = 'u8[512]{0}', space=vmem, size = 0x400, scoped, tag = 'input window, operand 4, single buffered']
    #allocation11 [shape = 'u8[2048]{0}', space=vmem, size = 0x800, scoped, tag = 'output window, operand 0, single buffered']
    %10 = vsyncpa [#allocation3], 0
    %11 = vsyncpa [#allocation6], 0
    %12 = vsyncpa [#allocation9], 0
    %13 = vsyncpa [#allocation4], 0
    // Predicated region
    $region2: #{tpu_custom_call.1} parent=1 // pred_check
      _
    $region3: #{tpu_custom_call.1} parent=1 // pred_check_branch
      %15 = sbr.rel (0) target = $region5
    $region4: #{tpu_custom_call.1} parent=1 // pred_region
      %s17 = ssub.s32 896, 896
      %18 = vsyncadd [#allocation3], %s17
      %s20 = sshll.u32 [#allocation2], 4
      %s21 = int_to_ptr.vmem [resolvable:$true] %s20
      %23 = dma.hbm_to_vmem [thread:$0]  %s0, 896, %s21, [#allocation3]
    $region5: #{tpu_custom_call.1} parent=1 // pred_fallthru
      _
    // Predicated region
    $region6: #{tpu_custom_call.1} parent=1 // pred_check
      _
    $region7: #{tpu_custom_call.1} parent=1 // pred_check_branch
      %25 = sbr.rel (0) target = $region9
    $region8: #{tpu_custom_call.1} parent=1 // pred_region
      %s27 = ssub.s32 6272, 6272
      %28 = vsyncadd [#allocation6], %s27
      %s29 = sshll.u32 [#allocation5], 4
      %s30 = int_to_ptr.vmem [resolvable:$true] %s29
      %35 = dma.hbm_to_vmem [thread:$0]  %s1, 6272, %s30, [#allocation6], 64, 64, 4
    $region9: #{tpu_custom_call.1} parent=1 // pred_fallthru
      _
    // Predicated region
    $region10: #{tpu_custom_call.1} parent=1 // pred_check
      _
    $region11: #{tpu_custom_call.1} parent=1 // pred_check_branch
      %37 = sbr.rel (0) target = $region13
    $region12: #{tpu_custom_call.1} parent=1 // pred_region
      %s39 = ssub.s32 16, 16
      %40 = vsyncadd [#allocation6], %s39
      %s42 = sshll.u32 [#allocation7], 4
      %s43 = int_to_ptr.vmem [resolvable:$true] %s42
      %45 = dma.hbm_to_vmem [thread:$0]  %s2, 16, %s43, [#allocation6]
    $region13: #{tpu_custom_call.1} parent=1 // pred_fallthru
      _
    // Predicated region
    $region14: #{tpu_custom_call.1} parent=1 // pred_check
      _
    $region15: #{tpu_custom_call.1} parent=1 // pred_check_branch
      %47 = sbr.rel (0) target = $region17
    $region16: #{tpu_custom_call.1} parent=1 // pred_region
      %s49 = ssub.s32 1024, 1024
      %50 = vsyncadd [#allocation9], %s49
      %s51 = sshll.u32 [#allocation8], 4
      %s52 = int_to_ptr.vmem [resolvable:$true] %s51
      %57 = dma.hbm_to_vmem [thread:$0]  %s3, 1024, %s52, [#allocation9], 64, 64, 4
    $region17: #{tpu_custom_call.1} parent=1 // pred_fallthru
      _
    // Predicated region
    $region18: #{tpu_custom_call.1} parent=1 // pred_check
      _
    $region19: #{tpu_custom_call.1} parent=1 // pred_check_branch
      %59 = sbr.rel (0) target = $region21
    $region20: #{tpu_custom_call.1} parent=1 // pred_region
      %s61 = ssub.s32 16, 16
      %62 = vsyncadd [#allocation9], %s61
      %s64 = sshll.u32 [#allocation10], 4
      %s65 = int_to_ptr.vmem [resolvable:$true] %s64
      %67 = dma.hbm_to_vmem [thread:$0]  %s4, 16, %s65, [#allocation9]
    $region21: #{tpu_custom_call.1} parent=1 // pred_fallthru
      _
    // Predicated region
    $region22: #{tpu_custom_call.1} parent=1 // pred_check
      _
    $region23: #{tpu_custom_call.1} parent=1 // pred_check_branch
      %69 = sbr.rel (0) target = $region25
    $region24: #{tpu_custom_call.1} parent=1 // pred_region
      %70 = dma.done [#allocation3], 896
    $region25: #{tpu_custom_call.1} parent=1 // pred_fallthru
      _
    // Predicated region
    $region26: #{tpu_custom_call.1} parent=1 // pred_check
      _
    $region27: #{tpu_custom_call.1} parent=1 // pred_check_branch
      %72 = sbr.rel (0) target = $region29
    $region28: #{tpu_custom_call.1} parent=1 // pred_region
      %73 = dma.done [#allocation6], 6272
    $region29: #{tpu_custom_call.1} parent=1 // pred_fallthru
      _
    // Predicated region
    $region30: #{tpu_custom_call.1} parent=1 // pred_check
      _
    $region31: #{tpu_custom_call.1} parent=1 // pred_check_branch
      %75 = sbr.rel (0) target = $region33
    $region32: #{tpu_custom_call.1} parent=1 // pred_region
      %76 = dma.done [#allocation6], 16
    $region33: #{tpu_custom_call.1} parent=1 // pred_fallthru
      _
    // Predicated region
    $region34: #{tpu_custom_call.1} parent=1 // pred_check
      _
    $region35: #{tpu_custom_call.1} parent=1 // pred_check_branch
      %78 = sbr.rel (0) target = $region37
    $region36: #{tpu_custom_call.1} parent=1 // pred_region
      %79 = dma.done [#allocation9], 1024
    $region37: #{tpu_custom_call.1} parent=1 // pred_fallthru
      _
    // Predicated region
    $region38: #{tpu_custom_call.1} parent=1 // pred_check
      _
    $region39: #{tpu_custom_call.1} parent=1 // pred_check_branch
      %81 = sbr.rel (0) target = $region41
    $region40: #{tpu_custom_call.1} parent=1 // pred_region
      %82 = dma.done [#allocation9], 16
    $region41: #{tpu_custom_call.1} parent=1 // pred_fallthru
      _
    %v84 = vld [vmem:[#allocation2] sm:$0xff]
    %v85 = vld [vmem:[#allocation2 + $0x8] sm:$0xff]
    %v86 = vld [vmem:[#allocation2 + $0x10] sm:$0xff]
    %v87 = vld [vmem:[#allocation2 + $0x18] sm:$0xff]
    %v88 = vld [vmem:[#allocation2 + $0x20] sm:$0xff]
    %v89 = vld [vmem:[#allocation2 + $0x28] sm:$0xff]
    %v90 = vld [vmem:[#allocation2 + $0x30] sm:$0xff]
    %v91 = vpack.c.bf16 %v84, %v84
    %v92 = vpack.c.bf16 %v85, %v85
    %v93 = vpack.c.bf16 %v86, %v86
    %v94 = vpack.c.bf16 %v87, %v87
    %v95 = vpack.c.bf16 %v88, %v88
    %v96 = vpack.c.bf16 %v89, %v89
    %v97 = vpack.c.bf16 %v90, %v90
    %v98 = vld [vmem:[#allocation5] sm:$0xf]
    %v99 = vld [vmem:[#allocation5 + $0x4] sm:$0xf]
    %v100 = vld [vmem:[#allocation5 + $0x8] sm:$0xf]
    %v101 = vld [vmem:[#allocation5 + $0xc] sm:$0xf]
    %v102 = vld [vmem:[#allocation5 + $0x10] sm:$0xf]
    %v103 = vld [vmem:[#allocation5 + $0x14] sm:$0xf]
    %v104 = vld [vmem:[#allocation5 + $0x18] sm:$0xf]
    %v105 = vld [vmem:[#allocation5 + $0x1c] sm:$0xf]
    %v106 = vld [vmem:[#allocation5 + $0x20] sm:$0xf]
    %v107 = vld [vmem:[#allocation5 + $0x24] sm:$0xf]
    %v108 = vld [vmem:[#allocation5 + $0x28] sm:$0xf]
    %v109 = vld [vmem:[#allocation5 + $0x2c] sm:$0xf]
    %v110 = vld [vmem:[#allocation5 + $0x30] sm:$0xf]
    %v111 = vld [vmem:[#allocation5 + $0x34] sm:$0xf]
    %v112 = vld [vmem:[#allocation5 + $0x38] sm:$0xf]
    %v113 = vld [vmem:[#allocation5 + $0x3c] sm:$0xf]
    %v114 = vld [vmem:[#allocation5 + $0x40] sm:$0xf]
    %v115 = vld [vmem:[#allocation5 + $0x44] sm:$0xf]
    %v116 = vld [vmem:[#allocation5 + $0x48] sm:$0xf]
    %v117 = vld [vmem:[#allocation5 + $0x4c] sm:$0xf]
    %v118 = vld [vmem:[#allocation5 + $0x50] sm:$0xf]
    %v119 = vld [vmem:[#allocation5 + $0x54] sm:$0xf]
    %v120 = vld [vmem:[#allocation5 + $0x58] sm:$0xf]
    %v121 = vld [vmem:[#allocation5 + $0x5c] sm:$0xf]
    %v122 = vld [vmem:[#allocation5 + $0x60] sm:$0xf]
    %v123 = vld [vmem:[#allocation5 + $0x64] sm:$0xf]
    %v124 = vld [vmem:[#allocation5 + $0x68] sm:$0xf]
    %v125 = vld [vmem:[#allocation5 + $0x6c] sm:$0xf]
    %v126 = vld [vmem:[#allocation5 + $0x70] sm:$0xf]
    %v127 = vld [vmem:[#allocation5 + $0x74] sm:$0xf]
    %v128 = vld [vmem:[#allocation5 + $0x78] sm:$0xf]
    %v129 = vld [vmem:[#allocation5 + $0x7c] sm:$0xf]
    %v130 = vld [vmem:[#allocation5 + $0x80] sm:$0xf]
    %v131 = vld [vmem:[#allocation5 + $0x84] sm:$0xf]
    %v132 = vld [vmem:[#allocation5 + $0x88] sm:$0xf]
    %v133 = vld [vmem:[#allocation5 + $0x8c] sm:$0xf]
    %v134 = vld [vmem:[#allocation5 + $0x90] sm:$0xf]
    %v135 = vld [vmem:[#allocation5 + $0x94] sm:$0xf]
    %v136 = vld [vmem:[#allocation5 + $0x98] sm:$0xf]
    %v137 = vld [vmem:[#allocation5 + $0x9c] sm:$0xf]
    %v138 = vld [vmem:[#allocation5 + $0xa0] sm:$0xf]
    %v139 = vld [vmem:[#allocation5 + $0xa4] sm:$0xf]
    %v140 = vld [vmem:[#allocation5 + $0xa8] sm:$0xf]
    %v141 = vld [vmem:[#allocation5 + $0xac] sm:$0xf]
    %v142 = vld [vmem:[#allocation5 + $0xb0] sm:$0xf]
    %v143 = vld [vmem:[#allocation5 + $0xb4] sm:$0xf]
    %v144 = vld [vmem:[#allocation5 + $0xb8] sm:$0xf]
    %v145 = vld [vmem:[#allocation5 + $0xbc] sm:$0xf]
    %v146 = vld [vmem:[#allocation5 + $0xc0] sm:$0xf]
    %v147 = vld [vmem:[#allocation5 + $0xc4] sm:$0xf]
    %v148 = vld [vmem:[#allocation5 + $0xc8] sm:$0xf]
    %v149 = vld [vmem:[#allocation5 + $0xcc] sm:$0xf]
    %v150 = vld [vmem:[#allocation5 + $0xd0] sm:$0xf]
    %v151 = vld [vmem:[#allocation5 + $0xd4] sm:$0xf]
    %v152 = vld [vmem:[#allocation5 + $0xd8] sm:$0xf]
    %v153 = vld [vmem:[#allocation5 + $0xdc] sm:$0xf]
    %v154 = vld [vmem:[#allocation5 + $0xe0] sm:$0xf]
    %v155 = vld [vmem:[#allocation5 + $0xe4] sm:$0xf]
    %v156 = vld [vmem:[#allocation5 + $0xe8] sm:$0xf]
    %v157 = vld [vmem:[#allocation5 + $0xec] sm:$0xf]
    %v158 = vld [vmem:[#allocation5 + $0xf0] sm:$0xf]
    %v159 = vld [vmem:[#allocation5 + $0xf4] sm:$0xf]
    %v160 = vld [vmem:[#allocation5 + $0xf8] sm:$0xf]
    %v161 = vld [vmem:[#allocation5 + $0xfc] sm:$0xf]
    %v162 = vld [vmem:[#allocation5 + $0x100] sm:$0xf]
    %v163 = vld [vmem:[#allocation5 + $0x104] sm:$0xf]
    %v164 = vld [vmem:[#allocation5 + $0x108] sm:$0xf]
    %v165 = vld [vmem:[#allocation5 + $0x10c] sm:$0xf]
    %v166 = vld [vmem:[#allocation5 + $0x110] sm:$0xf]
    %v167 = vld [vmem:[#allocation5 + $0x114] sm:$0xf]
    %v168 = vld [vmem:[#allocation5 + $0x118] sm:$0xf]
    %v169 = vld [vmem:[#allocation5 + $0x11c] sm:$0xf]
    %v170 = vld [vmem:[#allocation5 + $0x120] sm:$0xf]
    %v171 = vld [vmem:[#allocation5 + $0x124] sm:$0xf]
    %v172 = vld [vmem:[#allocation5 + $0x128] sm:$0xf]
    %v173 = vld [vmem:[#allocation5 + $0x12c] sm:$0xf]
    %v174 = vld [vmem:[#allocation5 + $0x130] sm:$0xf]
    %v175 = vld [vmem:[#allocation5 + $0x134] sm:$0xf]
    %v176 = vld [vmem:[#allocation5 + $0x138] sm:$0xf]
    %v177 = vld [vmem:[#allocation5 + $0x13c] sm:$0xf]
    %v178 = vld [vmem:[#allocation5 + $0x140] sm:$0xf]
    %v179 = vld [vmem:[#allocation5 + $0x144] sm:$0xf]
    %v180 = vld [vmem:[#allocation5 + $0x148] sm:$0xf]
    %v181 = vld [vmem:[#allocation5 + $0x14c] sm:$0xf]
    %v182 = vld [vmem:[#allocation5 + $0x150] sm:$0xf]
    %v183 = vld [vmem:[#allocation5 + $0x154] sm:$0xf]
    %v184 = vld [vmem:[#allocation5 + $0x158] sm:$0xf]
    %v185 = vld [vmem:[#allocation5 + $0x15c] sm:$0xf]
    %v186 = vld [vmem:[#allocation5 + $0x160] sm:$0xf]
    %v187 = vld [vmem:[#allocation5 + $0x164] sm:$0xf]
    %v188 = vld [vmem:[#allocation5 + $0x168] sm:$0xf]
    %v189 = vld [vmem:[#allocation5 + $0x16c] sm:$0xf]
    %v190 = vld [vmem:[#allocation5 + $0x170] sm:$0xf]
    %v191 = vld [vmem:[#allocation5 + $0x174] sm:$0xf]
    %v192 = vld [vmem:[#allocation5 + $0x178] sm:$0xf]
    %v193 = vld [vmem:[#allocation5 + $0x17c] sm:$0xf]
    %v194 = vld [vmem:[#allocation5 + $0x180] sm:$0xf]
    %v195 = vld [vmem:[#allocation5 + $0x184] sm:$0xf]
    %v196 = vld [vmem:[#allocation7] sm:$0x1]
    %v198 = vlaneseq
    %v199 = vshrl.u32 %v198, 7
    %v200 = vsub.s32 0, %v199
    %v201 = vrot.slane %v196, %v200
    %v301 = vunpack.c.l.b16 %v98
    %v302 = vunpack.c.l.b16 %v99
    %v303 = vunpack.c.l.b16 %v100
    %v304 = vunpack.c.l.b16 %v101
    %v305 = vunpack.c.l.b16 %v102
    %v306 = vunpack.c.l.b16 %v103
    %v307 = vunpack.c.l.b16 %v104
    %v308 = vunpack.c.l.b16 %v105
    %v309 = vunpack.c.l.b16 %v106
    %v310 = vunpack.c.l.b16 %v107
    %v311 = vunpack.c.l.b16 %v108
    %v312 = vunpack.c.l.b16 %v109
    %v313 = vunpack.c.l.b16 %v110
    %v314 = vunpack.c.l.b16 %v111
    %v315 = vunpack.c.l.b16 %v112
    %v316 = vunpack.c.l.b16 %v113
    %v317 = vunpack.c.l.b16 %v114
    %v318 = vunpack.c.l.b16 %v115
    %v319 = vunpack.c.l.b16 %v116
    %v320 = vunpack.c.l.b16 %v117
    %v321 = vunpack.c.l.b16 %v118
    %v322 = vunpack.c.l.b16 %v119
    %v323 = vunpack.c.l.b16 %v120
    %v324 = vunpack.c.l.b16 %v121
    %v325 = vunpack.c.l.b16 %v122
    %v326 = vunpack.c.l.b16 %v123
    %v327 = vunpack.c.l.b16 %v124
    %v328 = vunpack.c.l.b16 %v125
    %v329 = vunpack.c.l.b16 %v126
    %v330 = vunpack.c.l.b16 %v127
    %v331 = vunpack.c.l.b16 %v128
    %v332 = vunpack.c.l.b16 %v129
    %v333 = vunpack.c.l.b16 %v130
    %v334 = vunpack.c.l.b16 %v131
    %v335 = vunpack.c.l.b16 %v132
    %v336 = vunpack.c.l.b16 %v133
    %v337 = vunpack.c.l.b16 %v134
    %v338 = vunpack.c.l.b16 %v135
    %v339 = vunpack.c.l.b16 %v136
    %v340 = vunpack.c.l.b16 %v137
    %v341 = vunpack.c.l.b16 %v138
    %v342 = vunpack.c.l.b16 %v139
    %v343 = vunpack.c.l.b16 %v140
    %v344 = vunpack.c.l.b16 %v141
    %v345 = vunpack.c.l.b16 %v142
    %v346 = vunpack.c.l.b16 %v143
    %v347 = vunpack.c.l.b16 %v144
    %v348 = vunpack.c.l.b16 %v145
    %v349 = vunpack.c.l.b16 %v146
    %v350 = vunpack.c.l.b16 %v147
    %v351 = vunpack.c.l.b16 %v148
    %v352 = vunpack.c.l.b16 %v149
    %v353 = vunpack.c.l.b16 %v150
    %v354 = vunpack.c.l.b16 %v151
    %v355 = vunpack.c.l.b16 %v152
    %v356 = vunpack.c.l.b16 %v153
    %v357 = vunpack.c.l.b16 %v154
    %v358 = vunpack.c.l.b16 %v155
    %v359 = vunpack.c.l.b16 %v156
    %v360 = vunpack.c.l.b16 %v157
    %v361 = vunpack.c.l.b16 %v158
    %v362 = vunpack.c.l.b16 %v159
    %v363 = vunpack.c.l.b16 %v160
    %v364 = vunpack.c.l.b16 %v161
    %v365 = vunpack.c.l.b16 %v162
    %v366 = vunpack.c.l.b16 %v163
    %v367 = vunpack.c.l.b16 %v164
    %v368 = vunpack.c.l.b16 %v165
    %v369 = vunpack.c.l.b16 %v166
    %v370 = vunpack.c.l.b16 %v167
    %v371 = vunpack.c.l.b16 %v168
    %v372 = vunpack.c.l.b16 %v169
    %v373 = vunpack.c.l.b16 %v170
    %v374 = vunpack.c.l.b16 %v171
    %v375 = vunpack.c.l.b16 %v172
    %v376 = vunpack.c.l.b16 %v173
    %v377 = vunpack.c.l.b16 %v174
    %v378 = vunpack.c.l.b16 %v175
    %v379 = vunpack.c.l.b16 %v176
    %v380 = vunpack.c.l.b16 %v177
    %v381 = vunpack.c.l.b16 %v178
    %v382 = vunpack.c.l.b16 %v179
    %v383 = vunpack.c.l.b16 %v180
    %v384 = vunpack.c.l.b16 %v181
    %v385 = vunpack.c.l.b16 %v182
    %v386 = vunpack.c.l.b16 %v183
    %v387 = vunpack.c.l.b16 %v184
    %v388 = vunpack.c.l.b16 %v185
    %v389 = vunpack.c.l.b16 %v186
    %v390 = vunpack.c.l.b16 %v187
    %v391 = vunpack.c.l.b16 %v188
    %v392 = vunpack.c.l.b16 %v189
    %v393 = vunpack.c.l.b16 %v190
    %v394 = vunpack.c.l.b16 %v191
    %v395 = vunpack.c.l.b16 %v192
    %v396 = vunpack.c.l.b16 %v193
    %v397 = vunpack.c.l.b16 %v194
    %v398 = vunpack.c.l.b16 %v195
    %v399 = vpack.c.b16 %v302, %v301
    %v400 = vpack.c.b16 %v304, %v303
    %v401 = vpack.c.b16 %v306, %v305
    %v402 = vpack.c.b16 %v308, %v307
    %v403 = vpack.c.b16 %v310, %v309
    %v404 = vpack.c.b16 %v312, %v311
    %v405 = vpack.c.b16 %v314, %v313
    %v406 = vpack.c.b16 %v316, %v315
    %v407 = vpack.c.b16 %v318, %v317
    %v408 = vpack.c.b16 %v320, %v319
    %v409 = vpack.c.b16 %v322, %v321
    %v410 = vpack.c.b16 %v324, %v323
    %v411 = vpack.c.b16 %v326, %v325
    %v412 = vpack.c.b16 %v328, %v327
    %v413 = vpack.c.b16 %v330, %v329
    %v414 = vpack.c.b16 %v332, %v331
    %v415 = vpack.c.b16 %v334, %v333
    %v416 = vpack.c.b16 %v336, %v335
    %v417 = vpack.c.b16 %v338, %v337
    %v418 = vpack.c.b16 %v340, %v339
    %v419 = vpack.c.b16 %v342, %v341
    %v420 = vpack.c.b16 %v344, %v343
    %v421 = vpack.c.b16 %v346, %v345
    %v422 = vpack.c.b16 %v348, %v347
    %v423 = vpack.c.b16 %v350, %v349
    %v424 = vpack.c.b16 %v352, %v351
    %v425 = vpack.c.b16 %v354, %v353
    %v426 = vpack.c.b16 %v356, %v355
    %v427 = vpack.c.b16 %v358, %v357
    %v428 = vpack.c.b16 %v360, %v359
    %v429 = vpack.c.b16 %v362, %v361
    %v430 = vpack.c.b16 %v364, %v363
    %v431 = vpack.c.b16 %v366, %v365
    %v432 = vpack.c.b16 %v368, %v367
    %v433 = vpack.c.b16 %v370, %v369
    %v434 = vpack.c.b16 %v372, %v371
    %v435 = vpack.c.b16 %v374, %v373
    %v436 = vpack.c.b16 %v376, %v375
    %v437 = vpack.c.b16 %v378, %v377
    %v438 = vpack.c.b16 %v380, %v379
    %v439 = vpack.c.b16 %v382, %v381
    %v440 = vpack.c.b16 %v384, %v383
    %v441 = vpack.c.b16 %v386, %v385
    %v442 = vpack.c.b16 %v388, %v387
    %v443 = vpack.c.b16 %v390, %v389
    %v444 = vpack.c.b16 %v392, %v391
    %v445 = vpack.c.b16 %v394, %v393
    %v446 = vpack.c.b16 %v396, %v395
    %v447 = vpack.c.b16 %v398, %v397
    %vm497 = vcmask 130048
    %v499 = vsel %vm497, %v97, 0
    %501 = vmatprep.subr.bf16.mxu0 0
    %502 = vmatpush1.bf16.msra.mxu0 %v399
    %503 = vmatprep.subr.bf16.mxu0 0
    %504 = vmatpush1.bf16.msra.mxu0 %v400
    %505 = vmatprep.subr.bf16.mxu0 0
    %506 = vmatpush1.bf16.msra.mxu0 %v401
    %507 = vmatprep.subr.bf16.mxu0 0
    %508 = vmatpush1.bf16.msra.mxu0 %v402
    %509 = vmatprep.subr.bf16.mxu0 0
    %510 = vmatpush1.bf16.msra.mxu0 %v403
    %511 = vmatprep.subr.bf16.mxu0 0
    %512 = vmatpush1.bf16.msra.mxu0 %v404
    %513 = vmatprep.subr.bf16.mxu0 0
    %514 = vmatpush1.bf16.msra.mxu0 %v405
    %515 = vmatprep.subr.bf16.mxu0 0
    %516 = vmatpush1.bf16.msra.mxu0 %v406
    %517 = vmatprep.subr.bf16.mxu0 0
    %518 = vmatpush1.bf16.msra.mxu0 %v407
    %519 = vmatprep.subr.bf16.mxu0 0
    %520 = vmatpush1.bf16.msra.mxu0 %v408
    %521 = vmatprep.subr.bf16.mxu0 0
    %522 = vmatpush1.bf16.msra.mxu0 %v409
    %523 = vmatprep.subr.bf16.mxu0 0
    %524 = vmatpush1.bf16.msra.mxu0 %v410
    %525 = vmatprep.subr.bf16.mxu0 0
    %526 = vmatpush1.bf16.msra.mxu0 %v411
    %527 = vmatprep.subr.bf16.mxu0 0
    %528 = vmatpush1.bf16.msra.mxu0 %v412
    %529 = vmatprep.subr.bf16.mxu0 0
    %530 = vmatpush1.bf16.msra.mxu0 %v413
    %531 = vmatprep.subr.bf16.mxu0 0
    %532 = vmatpush1.bf16.msra.mxu0 %v414
    %533 = vmatprep.mubr.bf16.mxu0 %v92
    %534 = vmatmul.mubr.bf16.gmra.mrb[0].mxu0 %v91
    %v535 = vpop.f32.mrb[0].mxu0
    %v536 = vadd.f32 %v201, %v535
    %v537 = vpop.f32.mrb[0].mxu0
    %v538 = vpop.f32.mrb[0].mxu0
    %v539 = vpop.f32.mrb[0].mxu0
    %540 = vdwg.mxu0
    %541 = vmatprep.subr.bf16.mxu0 0
    %542 = vmatpush1.bf16.msra.mxu0 %v415
    %543 = vmatprep.subr.bf16.mxu0 0
    %544 = vmatpush1.bf16.msra.mxu0 %v416
    %545 = vmatprep.subr.bf16.mxu0 0
    %546 = vmatpush1.bf16.msra.mxu0 %v417
    %547 = vmatprep.subr.bf16.mxu0 0
    %548 = vmatpush1.bf16.msra.mxu0 %v418
    %549 = vmatprep.subr.bf16.mxu0 0
    %550 = vmatpush1.bf16.msra.mxu0 %v419
    %551 = vmatprep.subr.bf16.mxu0 0
    %552 = vmatpush1.bf16.msra.mxu0 %v420
    %553 = vmatprep.subr.bf16.mxu0 0
    %554 = vmatpush1.bf16.msra.mxu0 %v421
    %555 = vmatprep.subr.bf16.mxu0 0
    %556 = vmatpush1.bf16.msra.mxu0 %v422
    %557 = vmatprep.subr.bf16.mxu0 0
    %558 = vmatpush1.bf16.msra.mxu0 %v423
    %559 = vmatprep.subr.bf16.mxu0 0
    %560 = vmatpush1.bf16.msra.mxu0 %v424
    %561 = vmatprep.subr.bf16.mxu0 0
    %562 = vmatpush1.bf16.msra.mxu0 %v425
    %563 = vmatprep.subr.bf16.mxu0 0
    %564 = vmatpush1.bf16.msra.mxu0 %v426
    %565 = vmatprep.subr.bf16.mxu0 0
    %566 = vmatpush1.bf16.msra.mxu0 %v427
    %567 = vmatprep.subr.bf16.mxu0 0
    %568 = vmatpush1.bf16.msra.mxu0 %v428
    %569 = vmatprep.subr.bf16.mxu0 0
    %570 = vmatpush1.bf16.msra.mxu0 %v429
    %571 = vmatprep.subr.bf16.mxu0 0
    %572 = vmatpush1.bf16.msra.mxu0 %v430
    %573 = vmatprep.mubr.bf16.mxu0 %v94
    %574 = vmatmul.mubr.bf16.gmra.mrb[0].mxu0 %v93
    %v575 = vpop.f32.mrb[0].mxu0
    %v576 = vadd.f32 %v536, %v575
    %v577 = vpop.f32.mrb[0].mxu0
    %v578 = vpop.f32.mrb[0].mxu0
    %v579 = vpop.f32.mrb[0].mxu0
    %580 = vdwg.mxu0
    %581 = vmatprep.subr.bf16.mxu0 0
    %582 = vmatpush1.bf16.msra.mxu0 %v431
    %583 = vmatprep.subr.bf16.mxu0 0
    %584 = vmatpush1.bf16.msra.mxu0 %v432
    %585 = vmatprep.subr.bf16.mxu0 0
    %586 = vmatpush1.bf16.msra.mxu0 %v433
    %587 = vmatprep.subr.bf16.mxu0 0
    %588 = vmatpush1.bf16.msra.mxu0 %v434
    %589 = vmatprep.subr.bf16.mxu0 0
    %590 = vmatpush1.bf16.msra.mxu0 %v435
    %591 = vmatprep.subr.bf16.mxu0 0
    %592 = vmatpush1.bf16.msra.mxu0 %v436
    %593 = vmatprep.subr.bf16.mxu0 0
    %594 = vmatpush1.bf16.msra.mxu0 %v437
    %595 = vmatprep.subr.bf16.mxu0 0
    %596 = vmatpush1.bf16.msra.mxu0 %v438
    %597 = vmatprep.subr.bf16.mxu0 0
    %598 = vmatpush1.bf16.msra.mxu0 %v439
    %599 = vmatprep.subr.bf16.mxu0 0
    %600 = vmatpush1.bf16.msra.mxu0 %v440
    %601 = vmatprep.subr.bf16.mxu0 0
    %602 = vmatpush1.bf16.msra.mxu0 %v441
    %603 = vmatprep.subr.bf16.mxu0 0
    %604 = vmatpush1.bf16.msra.mxu0 %v442
    %605 = vmatprep.subr.bf16.mxu0 0
    %606 = vmatpush1.bf16.msra.mxu0 %v443
    %607 = vmatprep.subr.bf16.mxu0 0
    %608 = vmatpush1.bf16.msra.mxu0 %v444
    %609 = vmatprep.subr.bf16.mxu0 0
    %610 = vmatpush1.bf16.msra.mxu0 %v445
    %611 = vmatprep.subr.bf16.mxu0 0
    %612 = vmatpush1.bf16.msra.mxu0 %v446
    %613 = vmatprep.mubr.bf16.mxu0 %v96
    %614 = vmatmul.mubr.bf16.gmra.mrb[0].mxu0 %v95
    %v615 = vpop.f32.mrb[0].mxu0
    %v616 = vadd.f32 %v576, %v615
    %v617 = vpop.f32.mrb[0].mxu0
    %v618 = vpop.f32.mrb[0].mxu0
    %v619 = vpop.f32.mrb[0].mxu0
    %620 = vdwg.mxu0
    %621 = vmatprep.subr.bf16.mxu0 0
    %622 = vmatpush1.bf16.msra.mxu0 %v447
    %623 = vmatprep.subr.bf16.mxu0 0
    %624 = vmatpush1.bf16.msra.mxu0 0
    %625 = vmatprep.subr.bf16.mxu0 0
    %626 = vmatpush1.bf16.msra.mxu0 0
    %627 = vmatprep.subr.bf16.mxu0 0
    %628 = vmatpush1.bf16.msra.mxu0 0
    %629 = vmatprep.subr.bf16.mxu0 0
    %630 = vmatpush1.bf16.msra.mxu0 0
    %631 = vmatprep.subr.bf16.mxu0 0
    %632 = vmatpush1.bf16.msra.mxu0 0
    %633 = vmatprep.subr.bf16.mxu0 0
    %634 = vmatpush1.bf16.msra.mxu0 0
    %635 = vmatprep.subr.bf16.mxu0 0
    %636 = vmatpush1.bf16.msra.mxu0 0
    %637 = vmatprep.subr.bf16.mxu0 0
    %638 = vmatpush1.bf16.msra.mxu0 0
    %639 = vmatprep.subr.bf16.mxu0 0
    %640 = vmatpush1.bf16.msra.mxu0 0
    %641 = vmatprep.subr.bf16.mxu0 0
    %642 = vmatpush1.bf16.msra.mxu0 0
    %643 = vmatprep.subr.bf16.mxu0 0
    %644 = vmatpush1.bf16.msra.mxu0 0
    %645 = vmatprep.subr.bf16.mxu0 0
    %646 = vmatpush1.bf16.msra.mxu0 0
    %647 = vmatprep.subr.bf16.mxu0 0
    %648 = vmatpush1.bf16.msra.mxu0 0
    %649 = vmatprep.subr.bf16.mxu0 0
    %650 = vmatpush1.bf16.msra.mxu0 0
    %651 = vmatprep.subr.bf16.mxu0 0
    %652 = vmatpush1.bf16.msra.mxu0 0
    %653 = vmatprep.mubr.bf16.mxu0 0
    %654 = vmatmul.mubr.bf16.gmra.mrb[0].mxu0 %v499
    %v655 = vpop.f32.mrb[0].mxu0
    %v656 = vadd.f32 %v616, %v655
    %v657 = vpop.f32.mrb[0].mxu0
    %v658 = vpop.f32.mrb[0].mxu0
    %v659 = vpop.f32.mrb[0].mxu0
    %660 = vdwg.mxu0
    %v661 = vmax.f32 %v656, 0.0
    %v662 = vpack.c.bf16 %v661, %v661
    %v663 = vld [vmem:[#allocation8] sm:$0xf]
    %v664 = vld [vmem:[#allocation8 + $0x4] sm:$0xf]
    %v665 = vld [vmem:[#allocation8 + $0x8] sm:$0xf]
    %v666 = vld [vmem:[#allocation8 + $0xc] sm:$0xf]
    %v667 = vld [vmem:[#allocation8 + $0x10] sm:$0xf]
    %v668 = vld [vmem:[#allocation8 + $0x14] sm:$0xf]
    %v669 = vld [vmem:[#allocation8 + $0x18] sm:$0xf]
    %v670 = vld [vmem:[#allocation8 + $0x1c] sm:$0xf]
    %v671 = vld [vmem:[#allocation8 + $0x20] sm:$0xf]
    %v672 = vld [vmem:[#allocation8 + $0x24] sm:$0xf]
    %v673 = vld [vmem:[#allocation8 + $0x28] sm:$0xf]
    %v674 = vld [vmem:[#allocation8 + $0x2c] sm:$0xf]
    %v675 = vld [vmem:[#allocation8 + $0x30] sm:$0xf]
    %v676 = vld [vmem:[#allocation8 + $0x34] sm:$0xf]
    %v677 = vld [vmem:[#allocation8 + $0x38] sm:$0xf]
    %v678 = vld [vmem:[#allocation8 + $0x3c] sm:$0xf]
    %v679 = vld [vmem:[#allocation10] sm:$0x1]
    %v681 = vlaneseq
    %v682 = vshrl.u32 %v681, 7
    %v683 = vsub.s32 0, %v682
    %v684 = vrot.slane %v679, %v683
    %v702 = vunpack.c.l.b16 %v663
    %v703 = vunpack.c.l.b16 %v664
    %v704 = vunpack.c.l.b16 %v665
    %v705 = vunpack.c.l.b16 %v666
    %v706 = vunpack.c.l.b16 %v667
    %v707 = vunpack.c.l.b16 %v668
    %v708 = vunpack.c.l.b16 %v669
    %v709 = vunpack.c.l.b16 %v670
    %v710 = vunpack.c.l.b16 %v671
    %v711 = vunpack.c.l.b16 %v672
    %v712 = vunpack.c.l.b16 %v673
    %v713 = vunpack.c.l.b16 %v674
    %v714 = vunpack.c.l.b16 %v675
    %v715 = vunpack.c.l.b16 %v676
    %v716 = vunpack.c.l.b16 %v677
    %v717 = vunpack.c.l.b16 %v678
    %v718 = vpack.c.b16 %v703, %v702
    %v719 = vpack.c.b16 %v705, %v704
    %v720 = vpack.c.b16 %v707, %v706
    %v721 = vpack.c.b16 %v709, %v708
    %v722 = vpack.c.b16 %v711, %v710
    %v723 = vpack.c.b16 %v713, %v712
    %v724 = vpack.c.b16 %v715, %v714
    %v725 = vpack.c.b16 %v717, %v716
    %734 = vmatprep.subr.bf16.mxu0 0
    %735 = vmatpush1.bf16.msra.mxu0 %v718
    %736 = vmatprep.subr.bf16.mxu0 0
    %737 = vmatpush1.bf16.msra.mxu0 %v719
    %738 = vmatprep.subr.bf16.mxu0 0
    %739 = vmatpush1.bf16.msra.mxu0 %v720
    %740 = vmatprep.subr.bf16.mxu0 0
    %741 = vmatpush1.bf16.msra.mxu0 %v721
    %742 = vmatprep.subr.bf16.mxu0 0
    %743 = vmatpush1.bf16.msra.mxu0 %v722
    %744 = vmatprep.subr.bf16.mxu0 0
    %745 = vmatpush1.bf16.msra.mxu0 %v723
    %746 = vmatprep.subr.bf16.mxu0 0
    %747 = vmatpush1.bf16.msra.mxu0 %v724
    %748 = vmatprep.subr.bf16.mxu0 0
    %749 = vmatpush1.bf16.msra.mxu0 %v725
    %750 = vmatprep.subr.bf16.mxu0 0
    %751 = vmatpush1.bf16.msra.mxu0 0
    %752 = vmatprep.subr.bf16.mxu0 0
    %753 = vmatpush1.bf16.msra.mxu0 0
    %754 = vmatprep.subr.bf16.mxu0 0
    %755 = vmatpush1.bf16.msra.mxu0 0
    %756 = vmatprep.subr.bf16.mxu0 0
    %757 = vmatpush1.bf16.msra.mxu0 0
    %758 = vmatprep.subr.bf16.mxu0 0
    %759 = vmatpush1.bf16.msra.mxu0 0
    %760 = vmatprep.subr.bf16.mxu0 0
    %761 = vmatpush1.bf16.msra.mxu0 0
    %762 = vmatprep.subr.bf16.mxu0 0
    %763 = vmatpush1.bf16.msra.mxu0 0
    %764 = vmatprep.subr.bf16.mxu0 0
    %765 = vmatpush1.bf16.msra.mxu0 0
    %766 = vmatprep.mubr.bf16.mxu0 0
    %767 = vmatmul.mubr.bf16.gmra.mrb[0].mxu0 %v662
    %v768 = vpop.f32.mrb[0].mxu0
    %v769 = vadd.f32 %v684, %v768
    %v770 = vpop.f32.mrb[0].mxu0
    %v771 = vpop.f32.mrb[0].mxu0
    %v772 = vpop.f32.mrb[0].mxu0
    %773 = vdwg.mxu0
    %v774 = vpack.c.bf16 %v769, %v769
    %775 = vst [vmem:[#allocation11] sm:$0xf] %v774
    // Predicated region
    $region42: #{tpu_custom_call.1} parent=1 // pred_check
      _
    $region43: #{tpu_custom_call.1} parent=1 // pred_check_branch
      %777 = sbr.rel (0) target = $region45
    $region44: #{tpu_custom_call.1} parent=1 // pred_region
      %s779 = ssub.s32 64, 64
      %780 = vsyncadd [#allocation4], %s779
      %s782 = sshll.u32 [#allocation11], 4
      %s783 = int_to_ptr.vmem [resolvable:$true] %s782
      %785 = dma.vmem_to_hbm [thread:$0]  %s783, 64, %s5, [#allocation4]
    $region45: #{tpu_custom_call.1} parent=1 // pred_fallthru
      _
    // Predicated region
    $region46: #{tpu_custom_call.1} parent=1 // pred_check
      _
    $region47: #{tpu_custom_call.1} parent=1 // pred_check_branch
      %787 = sbr.rel (0) target = $region49
    $region48: #{tpu_custom_call.1} parent=1 // pred_region
      %788 = dma.done [#allocation4], 64
    $region49: #{tpu_custom_call.1} parent=1 // pred_fallthru
      _
    %789 = vsyncpa [#allocation3], 1
    %790 = vsyncpa [#allocation6], 1
    %791 = vsyncpa [#allocation9], 1
    %792 = vsyncpa [#allocation4], 1

</llo_original>
